<compile_context>
chip_gen: v5e
topology: v5e:2x2
jax: 0.10.0
libtpu: 0.0.40
codegen_flags: <defaults>
</compile_context>

<pallas_src>
import functools

import jax
import jax.numpy as jnp
import numpy as np
from jax.experimental import pallas as pl
from jax.experimental.pallas import tpu as pltpu

EPS = 1e-5
NEG_SLOPE = 0.1  # LeakyReLU(negative_slope=0.1)


# ------------------------------- fused kernel -----------------------------------

def _resblock_kernel(x_ref, m_ref, w1_ref, w2_ref, p_ref, o_ref, *, W):
    Cp, NHW = x_ref.shape
    inv_cnt = 1.0 / float(NHW)          # BN count = N*H*W (pad channels are all-zero)

    x = x_ref[...]                      # (Cp, NHW) f32
    m = m_ref[...]                      # (4, NHW)  f32: [top, bottom, left, right]
    prm = p_ref[...]                    # (Cp, 8)   f32: [b1, g1, be1, b2, g2, be2, 0, 0]
    b1, g1, be1 = prm[:, 0:1], prm[:, 1:2], prm[:, 2:3]
    b2, g2, be2 = prm[:, 3:4], prm[:, 4:5], prm[:, 5:6]

    # Boundary masks: compare + broadcast ONCE, reused by both convs (no re-broadcast
    # inside the tap loop — JAX does not CSE broadcast_in_dim).
    top = jnp.broadcast_to(m[0:1], (Cp, NHW)) != 0.0
    bot = jnp.broadcast_to(m[1:2], (Cp, NHW)) != 0.0
    left = jnp.broadcast_to(m[2:3], (Cp, NHW)) != 0.0
    right = jnp.broadcast_to(m[3:4], (Cp, NHW)) != 0.0

    def rollv(v, s):
        # circular lane rotation, jnp.roll semantics: out[i] = v[i - s]
        return pltpu.roll(v, s % NHW, 1)

    def conv3x3(a, wmat, bias):
        # reflect-pad(1) + 3x3 conv as a single MXU matmul (Cp,9Cp) x (9Cp,NHW).
        # Tap order k = kh*3 + kw matches the (Cout, kh, kw, Cin) weight reshape.
        r_up = jnp.where(top, rollv(a, -W), rollv(a, W))     # row h-1 (reflect -> h+1)
        r_dn = jnp.where(bot, rollv(a, W), rollv(a, -W))     # row h+1 (reflect -> h-1)
        taps = []
        for r in (r_up, a, r_dn):
            c_l = jnp.where(left, rollv(r, -1), rollv(r, 1))    # col w-1 (reflect -> w+1)
            c_r = jnp.where(right, rollv(r, 1), rollv(r, -1))   # col w+1 (reflect -> w-1)
            taps.extend([c_l, r, c_r])
        patch = jnp.concatenate(taps, axis=0).astype(jnp.bfloat16)   # (9*Cp, NHW)
        return jnp.dot(wmat, patch, preferred_element_type=jnp.float32) + bias

    def bn_fold(y, gamma, beta):
        # training-mode BN over (N,H,W) == all lanes; two-pass (shifted) variance
        mean = jnp.sum(y, axis=1, keepdims=True) * inv_cnt
        d = y - mean
        var = jnp.sum(d * d, axis=1, keepdims=True) * inv_cnt
        scale = gamma * jax.lax.rsqrt(var + EPS)
        return scale, beta - mean * scale

    # conv1 -> BN1 -> LeakyReLU(0.1)
    y1 = conv3x3(x, w1_ref[...], b1)
    sc1, sh1 = bn_fold(y1, g1, be1)
    h = y1 * sc1 + sh1
    h = jnp.where(h >= 0.0, h, NEG_SLOPE * h)

    # conv2 -> BN2 -> residual add (single lane-dense (Cp, NHW) store)
    y2 = conv3x3(h, w2_ref[...], b2)
    sc2, sh2 = bn_fold(y2, g2, be2)
    o_ref[...] = x + y2 * sc2 + sh2


# --------------------------------- wrapper --------------------------------------

@jax.jit
def resnet_block_bn(x_nchw, params):
    """x_nchw: (N, C, H, W) float32; params as produced by init_params."""
    w1, b1, g1, be1, w2, b2, g2, be2 = params
    N, C, H, W = x_nchw.shape
    HW, NHW = H * W, N * H * W
    Cp = max(8, ((C + 7) // 8) * 8)     # pad channels to a multiple of 8 sublanes

    # channels-major with batch folded onto the lane axis: (Cp, N*H*W)
    xf = jnp.transpose(x_nchw.astype(jnp.float32).reshape(N, C, HW), (1, 0, 2))
    xp = jnp.pad(xf.reshape(C, NHW), ((0, Cp - C), (0, 0)))

    # within-sample reflect-boundary masks (top / bottom / left / right), trace-time
    pos = np.arange(NHW) % HW
    col = pos % W
    masks = jnp.asarray(np.stack([pos < W, pos >= (H - 1) * W,
                                  col == 0, col == W - 1]).astype(np.float32))

    def prep_w(w):   # PyTorch (Cout, Cin, 3, 3) -> (Cp, 9*Cp) bf16, k = kh*3 + kw
        wp = jnp.zeros((Cp, Cp, 3, 3), jnp.float32).at[:C, :C].set(w.astype(jnp.float32))
        return jnp.transpose(wp, (0, 2, 3, 1)).reshape(Cp, 9 * Cp).astype(jnp.bfloat16)

    def colp(v):     # (C,) -> (Cp,), zero-padded (pad gamma=0 keeps pad channels zero)
        return jnp.pad(v.astype(jnp.float32), (0, Cp - C))

    zeros = jnp.zeros((Cp,), jnp.float32)
    cparams = jnp.stack([colp(b1), colp(g1), colp(be1),
                         colp(b2), colp(g2), colp(be2), zeros, zeros], axis=1)  # (Cp, 8)

    out_p = pl.pallas_call(
        functools.partial(_resblock_kernel, W=W),
        out_shape=jax.ShapeDtypeStruct((Cp, NHW), jnp.float32),
    )(xp, masks, prep_w(w1), prep_w(w2), cparams)

    out = jnp.transpose(out_p[:C].reshape(C, N, HW), (1, 0, 2))
    return out.reshape(N, C, H, W)


# --------------------------- pure-JAX reference ----------------------------------

def ref_forward(x_nchw, params):
    w1, b1, g1, be1, w2, b2, g2, be2 = params
    x = jnp.transpose(x_nchw, (0, 2, 3, 1)).astype(jnp.float32)

    def pad(y):
        return jnp.pad(y, ((0, 0), (1, 1), (1, 1), (0, 0)), mode="reflect")

    def conv(y, w, b):
        wk = jnp.transpose(w, (2, 3, 1, 0)).astype(jnp.float32)   # HWIO
        return jax.lax.conv_general_dilated(
            y, wk, (1, 1), "VALID",
            dimension_numbers=("NHWC", "HWIO", "NHWC")) + b

    def bn(y, g, be):
        m = y.mean((0, 1, 2))
        v = ((y - m) ** 2).mean((0, 1, 2))
        return g * (y - m) / jnp.sqrt(v + EPS) + be

    h = bn(conv(pad(x), w1, b1), g1, be1)
    h = jnp.where(h >= 0, h, NEG_SLOPE * h)
    h = bn(conv(pad(h), w2, b2), g2, be2)
    return jnp.transpose(x + h, (0, 3, 1, 2))


# ------------------------------- params ------------------------------------------

def init_params(key, c):
    ks = jax.random.split(key, 8)
    w1 = 0.1 * jax.random.normal(ks[0], (c, c, 3, 3), jnp.float32)  # Conv2d weight
    b1 = 0.1 * jax.random.normal(ks[1], (c,), jnp.float32)          # Conv2d bias
    g1 = 1.0 + 0.1 * jax.random.normal(ks[2], (c,), jnp.float32)    # BN gamma
    be1 = 0.1 * jax.random.normal(ks[3], (c,), jnp.float32)         # BN beta
    w2 = 0.1 * jax.random.normal(ks[4], (c, c, 3, 3), jnp.float32)
    b2 = 0.1 * jax.random.normal(ks[5], (c,), jnp.float32)
    g2 = 1.0 + 0.1 * jax.random.normal(ks[6], (c,), jnp.float32)
    be2 = 0.1 * jax.random.normal(ks[7], (c,), jnp.float32)
    return (w1, b1, g1, be1, w2, b2, g2, be2)


if __name__ == "__main__":
    key = jax.random.PRNGKey(0)
    kx, kp = jax.random.split(key)

    N, C, H, W = 2, 4, 16, 16
    x = jax.random.normal(kx, (N, C, H, W), jnp.float32)            # NCHW input
    params = init_params(kp, C)

    out = jax.block_until_ready(resnet_block_bn(x, params))
    ref = jax.block_until_ready(ref_forward(x, params))

    # tolerance sized for bf16 MXU operands vs. the all-f32 reference
    np.testing.assert_allclose(np.asarray(out), np.asarray(ref),
                               rtol=4e-2, atol=4e-2)
    assert out.shape == x.shape and out.dtype == jnp.float32
    print("KERNEL_OK")
</pallas_src>

<mosaic_0001>
module attributes {stable_mosaic.version = 11 : i64} {
  func.func @_resblock_kernel(%arg0: memref<8x512xf32, #tpu.memory_space<vmem>>, %arg1: memref<4x512xf32, #tpu.memory_space<vmem>>, %arg2: memref<8x72xbf16, #tpu.memory_space<vmem>>, %arg3: memref<8x72xbf16, #tpu.memory_space<vmem>>, %arg4: memref<8x8xf32, #tpu.memory_space<vmem>>, %arg5: memref<8x512xf32, #tpu.memory_space<vmem>>) attributes {dimension_semantics = [], scalar_prefetch = 0 : i64, scratch_operands = 0 : i64, tpu.core_type = #tpu.core_type<tc>} {
    %c0 = arith.constant 0 : index
    %c0_0 = arith.constant 0 : index
    %0 = vector.load %arg0[%c0, %c0_0] : memref<8x512xf32, #tpu.memory_space<vmem>>, vector<8x512xf32>
    %c0_1 = arith.constant 0 : index
    %c0_2 = arith.constant 0 : index
    %1 = vector.load %arg1[%c0_1, %c0_2] : memref<4x512xf32, #tpu.memory_space<vmem>>, vector<4x512xf32>
    %c0_3 = arith.constant 0 : index
    %c0_4 = arith.constant 0 : index
    %2 = vector.load %arg4[%c0_3, %c0_4] : memref<8x8xf32, #tpu.memory_space<vmem>>, vector<8x8xf32>
    %3 = vector.extract_strided_slice %2 {offsets = [0, 0], sizes = [8, 1], strides = [1, 1]} : vector<8x8xf32> to vector<8x1xf32>
    %4 = vector.extract_strided_slice %2 {offsets = [0, 1], sizes = [8, 1], strides = [1, 1]} : vector<8x8xf32> to vector<8x1xf32>
    %5 = vector.extract_strided_slice %2 {offsets = [0, 2], sizes = [8, 1], strides = [1, 1]} : vector<8x8xf32> to vector<8x1xf32>
    %6 = vector.extract_strided_slice %2 {offsets = [0, 3], sizes = [8, 1], strides = [1, 1]} : vector<8x8xf32> to vector<8x1xf32>
    %7 = vector.extract_strided_slice %2 {offsets = [0, 4], sizes = [8, 1], strides = [1, 1]} : vector<8x8xf32> to vector<8x1xf32>
    %8 = vector.extract_strided_slice %2 {offsets = [0, 5], sizes = [8, 1], strides = [1, 1]} : vector<8x8xf32> to vector<8x1xf32>
    %9 = vector.extract_strided_slice %1 {offsets = [0, 0], sizes = [1, 512], strides = [1, 1]} : vector<4x512xf32> to vector<1x512xf32>
    %10 = vector.shape_cast %9 : vector<1x512xf32> to vector<1x512xf32>
    %11 = vector.broadcast %10 : vector<1x512xf32> to vector<8x512xf32>
    %cst = arith.constant 0.000000e+00 : f32
    %12 = vector.broadcast %cst : f32 to vector<8x512xf32>
    %13 = arith.cmpf one, %11, %12 : vector<8x512xf32>
    %14 = vector.extract_strided_slice %1 {offsets = [1, 0], sizes = [1, 512], strides = [1, 1]} : vector<4x512xf32> to vector<1x512xf32>
    %15 = vector.shape_cast %14 : vector<1x512xf32> to vector<1x512xf32>
    %16 = vector.broadcast %15 : vector<1x512xf32> to vector<8x512xf32>
    %cst_5 = arith.constant 0.000000e+00 : f32
    %17 = vector.broadcast %cst_5 : f32 to vector<8x512xf32>
    %18 = arith.cmpf one, %16, %17 : vector<8x512xf32>
    %19 = vector.extract_strided_slice %1 {offsets = [2, 0], sizes = [1, 512], strides = [1, 1]} : vector<4x512xf32> to vector<1x512xf32>
    %20 = vector.shape_cast %19 : vector<1x512xf32> to vector<1x512xf32>
    %21 = vector.broadcast %20 : vector<1x512xf32> to vector<8x512xf32>
    %cst_6 = arith.constant 0.000000e+00 : f32
    %22 = vector.broadcast %cst_6 : f32 to vector<8x512xf32>
    %23 = arith.cmpf one, %21, %22 : vector<8x512xf32>
    %24 = vector.extract_strided_slice %1 {offsets = [3, 0], sizes = [1, 512], strides = [1, 1]} : vector<4x512xf32> to vector<1x512xf32>
    %25 = vector.shape_cast %24 : vector<1x512xf32> to vector<1x512xf32>
    %26 = vector.broadcast %25 : vector<1x512xf32> to vector<8x512xf32>
    %cst_7 = arith.constant 0.000000e+00 : f32
    %27 = vector.broadcast %cst_7 : f32 to vector<8x512xf32>
    %28 = arith.cmpf one, %26, %27 : vector<8x512xf32>
    %c0_8 = arith.constant 0 : index
    %c0_9 = arith.constant 0 : index
    %29 = vector.load %arg2[%c0_8, %c0_9] : memref<8x72xbf16, #tpu.memory_space<vmem>>, vector<8x72xbf16>
    %c496_i32 = arith.constant 496 : i32
    %30 = tpu.dynamic_rotate %0 by %c496_i32 dim 1 : vector<8x512xf32>, i32 -> vector<8x512xf32>
    %c16_i32 = arith.constant 16 : i32
    %31 = tpu.dynamic_rotate %0 by %c16_i32 dim 1 : vector<8x512xf32>, i32 -> vector<8x512xf32>
    %32 = arith.select %13, %30, %31 : vector<8x512xi1>, vector<8x512xf32>
    %c16_i32_10 = arith.constant 16 : i32
    %33 = tpu.dynamic_rotate %0 by %c16_i32_10 dim 1 : vector<8x512xf32>, i32 -> vector<8x512xf32>
    %c496_i32_11 = arith.constant 496 : i32
    %34 = tpu.dynamic_rotate %0 by %c496_i32_11 dim 1 : vector<8x512xf32>, i32 -> vector<8x512xf32>
    %35 = arith.select %18, %33, %34 : vector<8x512xi1>, vector<8x512xf32>
    %c511_i32 = arith.constant 511 : i32
    %36 = tpu.dynamic_rotate %32 by %c511_i32 dim 1 : vector<8x512xf32>, i32 -> vector<8x512xf32>
    %c1_i32 = arith.constant 1 : i32
    %37 = tpu.dynamic_rotate %32 by %c1_i32 dim 1 : vector<8x512xf32>, i32 -> vector<8x512xf32>
    %38 = arith.select %23, %36, %37 : vector<8x512xi1>, vector<8x512xf32>
    %c1_i32_12 = arith.constant 1 : i32
    %39 = tpu.dynamic_rotate %32 by %c1_i32_12 dim 1 : vector<8x512xf32>, i32 -> vector<8x512xf32>
    %c511_i32_13 = arith.constant 511 : i32
    %40 = tpu.dynamic_rotate %32 by %c511_i32_13 dim 1 : vector<8x512xf32>, i32 -> vector<8x512xf32>
    %41 = arith.select %28, %39, %40 : vector<8x512xi1>, vector<8x512xf32>
    %c511_i32_14 = arith.constant 511 : i32
    %42 = tpu.dynamic_rotate %0 by %c511_i32_14 dim 1 : vector<8x512xf32>, i32 -> vector<8x512xf32>
    %c1_i32_15 = arith.constant 1 : i32
    %43 = tpu.dynamic_rotate %0 by %c1_i32_15 dim 1 : vector<8x512xf32>, i32 -> vector<8x512xf32>
    %44 = arith.select %23, %42, %43 : vector<8x512xi1>, vector<8x512xf32>
    %c1_i32_16 = arith.constant 1 : i32
    %45 = tpu.dynamic_rotate %0 by %c1_i32_16 dim 1 : vector<8x512xf32>, i32 -> vector<8x512xf32>
    %c511_i32_17 = arith.constant 511 : i32
    %46 = tpu.dynamic_rotate %0 by %c511_i32_17 dim 1 : vector<8x512xf32>, i32 -> vector<8x512xf32>
    %47 = arith.select %28, %45, %46 : vector<8x512xi1>, vector<8x512xf32>
    %c511_i32_18 = arith.constant 511 : i32
    %48 = tpu.dynamic_rotate %35 by %c511_i32_18 dim 1 : vector<8x512xf32>, i32 -> vector<8x512xf32>
    %c1_i32_19 = arith.constant 1 : i32
    %49 = tpu.dynamic_rotate %35 by %c1_i32_19 dim 1 : vector<8x512xf32>, i32 -> vector<8x512xf32>
    %50 = arith.select %23, %48, %49 : vector<8x512xi1>, vector<8x512xf32>
    %c1_i32_20 = arith.constant 1 : i32
    %51 = tpu.dynamic_rotate %35 by %c1_i32_20 dim 1 : vector<8x512xf32>, i32 -> vector<8x512xf32>
    %c511_i32_21 = arith.constant 511 : i32
    %52 = tpu.dynamic_rotate %35 by %c511_i32_21 dim 1 : vector<8x512xf32>, i32 -> vector<8x512xf32>
    %53 = arith.select %28, %51, %52 : vector<8x512xi1>, vector<8x512xf32>
    %54 = tpu.concatenate %38, %32, %41, %44, %0, %47, %50, %35, %53 in 0 : vector<8x512xf32>, vector<8x512xf32>, vector<8x512xf32>, vector<8x512xf32>, vector<8x512xf32>, vector<8x512xf32>, vector<8x512xf32>, vector<8x512xf32>, vector<8x512xf32> -> vector<72x512xf32>
    %55 = arith.truncf %54 : vector<72x512xf32> to vector<72x512xbf16>
    %cst_22 = arith.constant dense<0.000000e+00> : vector<8x512xf32>
    %56 = tpu.matmul %29, %55, %cst_22 {dimension_numbers = #tpu.dot_dimension_numbers<[1], [0], [0], [1], [0, 0, 1, 1], [], []>} : vector<8x72xbf16>, vector<72x512xbf16>, vector<8x512xf32> -> vector<8x512xf32>
    %57 = vector.broadcast %3 : vector<8x1xf32> to vector<8x512xf32>
    %58 = arith.addf %56, %57 : vector<8x512xf32>
    %cst_23 = arith.constant dense<0.000000e+00> : vector<8xf32>
    %59 = vector.multi_reduction <add>, %58, %cst_23 [1] : vector<8x512xf32> to vector<8xf32>
    %60 = vector.shape_cast %59 : vector<8xf32> to vector<8x1xf32>
    %cst_24 = arith.constant 0.001953125 : f32
    %61 = vector.broadcast %cst_24 : f32 to vector<8x1xf32>
    %62 = arith.mulf %60, %61 : vector<8x1xf32>
    %63 = vector.broadcast %62 : vector<8x1xf32> to vector<8x512xf32>
    %64 = arith.subf %58, %63 : vector<8x512xf32>
    %65 = arith.mulf %64, %64 : vector<8x512xf32>
    %cst_25 = arith.constant dense<0.000000e+00> : vector<8xf32>
    %66 = vector.multi_reduction <add>, %65, %cst_25 [1] : vector<8x512xf32> to vector<8xf32>
    %67 = vector.shape_cast %66 : vector<8xf32> to vector<8x1xf32>
    %cst_26 = arith.constant 0.001953125 : f32
    %68 = vector.broadcast %cst_26 : f32 to vector<8x1xf32>
    %69 = arith.mulf %67, %68 : vector<8x1xf32>
    %cst_27 = arith.constant 9.99999974E-6 : f32
    %70 = vector.broadcast %cst_27 : f32 to vector<8x1xf32>
    %71 = arith.addf %69, %70 : vector<8x1xf32>
    %72 = math.rsqrt %71 : vector<8x1xf32>
    %73 = arith.mulf %4, %72 : vector<8x1xf32>
    %74 = arith.mulf %62, %73 : vector<8x1xf32>
    %75 = arith.subf %5, %74 : vector<8x1xf32>
    %76 = vector.broadcast %73 : vector<8x1xf32> to vector<8x512xf32>
    %77 = arith.mulf %58, %76 : vector<8x512xf32>
    %78 = vector.broadcast %75 : vector<8x1xf32> to vector<8x512xf32>
    %79 = arith.addf %77, %78 : vector<8x512xf32>
    %cst_28 = arith.constant 0.000000e+00 : f32
    %80 = vector.broadcast %cst_28 : f32 to vector<8x512xf32>
    %81 = arith.cmpf oge, %79, %80 : vector<8x512xf32>
    %cst_29 = arith.constant 1.000000e-01 : f32
    %82 = vector.broadcast %cst_29 : f32 to vector<8x512xf32>
    %83 = arith.mulf %82, %79 : vector<8x512xf32>
    %84 = arith.select %81, %79, %83 : vector<8x512xi1>, vector<8x512xf32>
    %c0_30 = arith.constant 0 : index
    %c0_31 = arith.constant 0 : index
    %85 = vector.load %arg3[%c0_30, %c0_31] : memref<8x72xbf16, #tpu.memory_space<vmem>>, vector<8x72xbf16>
    %c496_i32_32 = arith.constant 496 : i32
    %86 = tpu.dynamic_rotate %84 by %c496_i32_32 dim 1 : vector<8x512xf32>, i32 -> vector<8x512xf32>
    %c16_i32_33 = arith.constant 16 : i32
    %87 = tpu.dynamic_rotate %84 by %c16_i32_33 dim 1 : vector<8x512xf32>, i32 -> vector<8x512xf32>
    %88 = arith.select %13, %86, %87 : vector<8x512xi1>, vector<8x512xf32>
    %c16_i32_34 = arith.constant 16 : i32
    %89 = tpu.dynamic_rotate %84 by %c16_i32_34 dim 1 : vector<8x512xf32>, i32 -> vector<8x512xf32>
    %c496_i32_35 = arith.constant 496 : i32
    %90 = tpu.dynamic_rotate %84 by %c496_i32_35 dim 1 : vector<8x512xf32>, i32 -> vector<8x512xf32>
    %91 = arith.select %18, %89, %90 : vector<8x512xi1>, vector<8x512xf32>
    %c511_i32_36 = arith.constant 511 : i32
    %92 = tpu.dynamic_rotate %88 by %c511_i32_36 dim 1 : vector<8x512xf32>, i32 -> vector<8x512xf32>
    %c1_i32_37 = arith.constant 1 : i32
    %93 = tpu.dynamic_rotate %88 by %c1_i32_37 dim 1 : vector<8x512xf32>, i32 -> vector<8x512xf32>
    %94 = arith.select %23, %92, %93 : vector<8x512xi1>, vector<8x512xf32>
    %c1_i32_38 = arith.constant 1 : i32
    %95 = tpu.dynamic_rotate %88 by %c1_i32_38 dim 1 : vector<8x512xf32>, i32 -> vector<8x512xf32>
    %c511_i32_39 = arith.constant 511 : i32
    %96 = tpu.dynamic_rotate %88 by %c511_i32_39 dim 1 : vector<8x512xf32>, i32 -> vector<8x512xf32>
    %97 = arith.select %28, %95, %96 : vector<8x512xi1>, vector<8x512xf32>
    %c511_i32_40 = arith.constant 511 : i32
    %98 = tpu.dynamic_rotate %84 by %c511_i32_40 dim 1 : vector<8x512xf32>, i32 -> vector<8x512xf32>
    %c1_i32_41 = arith.constant 1 : i32
    %99 = tpu.dynamic_rotate %84 by %c1_i32_41 dim 1 : vector<8x512xf32>, i32 -> vector<8x512xf32>
    %100 = arith.select %23, %98, %99 : vector<8x512xi1>, vector<8x512xf32>
    %c1_i32_42 = arith.constant 1 : i32
    %101 = tpu.dynamic_rotate %84 by %c1_i32_42 dim 1 : vector<8x512xf32>, i32 -> vector<8x512xf32>
    %c511_i32_43 = arith.constant 511 : i32
    %102 = tpu.dynamic_rotate %84 by %c511_i32_43 dim 1 : vector<8x512xf32>, i32 -> vector<8x512xf32>
    %103 = arith.select %28, %101, %102 : vector<8x512xi1>, vector<8x512xf32>
    %c511_i32_44 = arith.constant 511 : i32
    %104 = tpu.dynamic_rotate %91 by %c511_i32_44 dim 1 : vector<8x512xf32>, i32 -> vector<8x512xf32>
    %c1_i32_45 = arith.constant 1 : i32
    %105 = tpu.dynamic_rotate %91 by %c1_i32_45 dim 1 : vector<8x512xf32>, i32 -> vector<8x512xf32>
    %106 = arith.select %23, %104, %105 : vector<8x512xi1>, vector<8x512xf32>
    %c1_i32_46 = arith.constant 1 : i32
    %107 = tpu.dynamic_rotate %91 by %c1_i32_46 dim 1 : vector<8x512xf32>, i32 -> vector<8x512xf32>
    %c511_i32_47 = arith.constant 511 : i32
    %108 = tpu.dynamic_rotate %91 by %c511_i32_47 dim 1 : vector<8x512xf32>, i32 -> vector<8x512xf32>
    %109 = arith.select %28, %107, %108 : vector<8x512xi1>, vector<8x512xf32>
    %110 = tpu.concatenate %94, %88, %97, %100, %84, %103, %106, %91, %109 in 0 : vector<8x512xf32>, vector<8x512xf32>, vector<8x512xf32>, vector<8x512xf32>, vector<8x512xf32>, vector<8x512xf32>, vector<8x512xf32>, vector<8x512xf32>, vector<8x512xf32> -> vector<72x512xf32>
    %111 = arith.truncf %110 : vector<72x512xf32> to vector<72x512xbf16>
    %cst_48 = arith.constant dense<0.000000e+00> : vector<8x512xf32>
    %112 = tpu.matmul %85, %111, %cst_48 {dimension_numbers = #tpu.dot_dimension_numbers<[1], [0], [0], [1], [0, 0, 1, 1], [], []>} : vector<8x72xbf16>, vector<72x512xbf16>, vector<8x512xf32> -> vector<8x512xf32>
    %113 = vector.broadcast %6 : vector<8x1xf32> to vector<8x512xf32>
    %114 = arith.addf %112, %113 : vector<8x512xf32>
    %cst_49 = arith.constant dense<0.000000e+00> : vector<8xf32>
    %115 = vector.multi_reduction <add>, %114, %cst_49 [1] : vector<8x512xf32> to vector<8xf32>
    %116 = vector.shape_cast %115 : vector<8xf32> to vector<8x1xf32>
    %cst_50 = arith.constant 0.001953125 : f32
    %117 = vector.broadcast %cst_50 : f32 to vector<8x1xf32>
    %118 = arith.mulf %116, %117 : vector<8x1xf32>
    %119 = vector.broadcast %118 : vector<8x1xf32> to vector<8x512xf32>
    %120 = arith.subf %114, %119 : vector<8x512xf32>
    %121 = arith.mulf %120, %120 : vector<8x512xf32>
    %cst_51 = arith.constant dense<0.000000e+00> : vector<8xf32>
    %122 = vector.multi_reduction <add>, %121, %cst_51 [1] : vector<8x512xf32> to vector<8xf32>
    %123 = vector.shape_cast %122 : vector<8xf32> to vector<8x1xf32>
    %cst_52 = arith.constant 0.001953125 : f32
    %124 = vector.broadcast %cst_52 : f32 to vector<8x1xf32>
    %125 = arith.mulf %123, %124 : vector<8x1xf32>
    %cst_53 = arith.constant 9.99999974E-6 : f32
    %126 = vector.broadcast %cst_53 : f32 to vector<8x1xf32>
    %127 = arith.addf %125, %126 : vector<8x1xf32>
    %128 = math.rsqrt %127 : vector<8x1xf32>
    %129 = arith.mulf %7, %128 : vector<8x1xf32>
    %130 = arith.mulf %118, %129 : vector<8x1xf32>
    %131 = arith.subf %8, %130 : vector<8x1xf32>
    %132 = vector.broadcast %129 : vector<8x1xf32> to vector<8x512xf32>
    %133 = arith.mulf %114, %132 : vector<8x512xf32>
    %134 = arith.addf %0, %133 : vector<8x512xf32>
    %135 = vector.broadcast %131 : vector<8x1xf32> to vector<8x512xf32>
    %136 = arith.addf %134, %135 : vector<8x512xf32>
    %c0_54 = arith.constant 0 : index
    %c0_55 = arith.constant 0 : index
    %137 = vector.load %arg5[%c0_54, %c0_55] : memref<8x512xf32, #tpu.memory_space<vmem>>, vector<8x512xf32>
    tpu.vector_store %arg5[%c0_54, %c0_55], %136 {strides = array<i32>} : memref<8x512xf32, #tpu.memory_space<vmem>>, vector<8x512xf32>,
    return
  }
}

</mosaic_0001>

<llo_original>
// kernel: resnet_block_bn.1
$region0: #{resnet_block_bn.1}
  #allocation0 [shape = 'u32[]', space=smem, size = 0x4, offset = 0x4, fixed_abs, tag = 'smem constant byte address 0x4 - core index']
  #allocation1 [shape = 'u32[72,128]{1,0:T(1,128)}', space=vmem, size = 0x9000, scoped, tag = 'internal scratch']
  %s0 = inlined_call_operand.vmem [shape: f32[8,512], index: 0, kind: input, shape index: {}]
  %s1 = inlined_call_operand.vmem [shape: f32[4,512], index: 1, kind: input, shape index: {}]
  %s2 = inlined_call_operand.vmem [shape: bf16[8,72], index: 2, kind: input, shape index: {}]
  %s3 = inlined_call_operand.vmem [shape: bf16[8,72], index: 3, kind: input, shape index: {}]
  %s4 = inlined_call_operand.vmem [shape: f32[8,8], index: 4, kind: input, shape index: {}]
  %s5 = inlined_call_operand.vmem [shape: f32[8,512], index: 5, kind: output, shape index: {}]
  %s6 = sld [smem:[#allocation0]]
  $region30: #{resnet_block_bn.1} parent=0
    _
  %s8 = ssub.s32 1, %s6
  %s9 = scalar_select 0, %s8, %s6
  // Predicated region
  $region2: #{resnet_block_bn.1} parent=0 // pred_check
    _
  $region3: #{resnet_block_bn.1} parent=0 // pred_check_branch
    %11 = sbr.rel (0) target = $region5
  $region4: #{resnet_block_bn.1} parent=0 // pred_region
    _
  $region5: #{resnet_block_bn.1} parent=0 // pred_fallthru
    _
  // Predicated region
  $region6: #{resnet_block_bn.1} parent=0 // pred_check
    _
  $region7: #{resnet_block_bn.1} parent=0 // pred_check_branch
    %13 = sbr.rel (0) target = $region9
  $region8: #{resnet_block_bn.1} parent=0 // pred_region
    _
  $region9: #{resnet_block_bn.1} parent=0 // pred_fallthru
    _
  // Predicated region
  $region10: #{resnet_block_bn.1} parent=0 // pred_check
    _
  $region11: #{resnet_block_bn.1} parent=0 // pred_check_branch
    %15 = sbr.rel (0) target = $region13
  $region12: #{resnet_block_bn.1} parent=0 // pred_region
    _
  $region13: #{resnet_block_bn.1} parent=0 // pred_fallthru
    _
  // Predicated region
  $region14: #{resnet_block_bn.1} parent=0 // pred_check
    _
  $region15: #{resnet_block_bn.1} parent=0 // pred_check_branch
    %17 = sbr.rel (0) target = $region17
  $region16: #{resnet_block_bn.1} parent=0 // pred_region
    _
  $region17: #{resnet_block_bn.1} parent=0 // pred_fallthru
    _
  // Predicated region
  $region18: #{resnet_block_bn.1} parent=0 // pred_check
    _
  $region19: #{resnet_block_bn.1} parent=0 // pred_check_branch
    %19 = sbr.rel (0) target = $region21
  $region20: #{resnet_block_bn.1} parent=0 // pred_region
    _
  $region21: #{resnet_block_bn.1} parent=0 // pred_fallthru
    _
  %v21 = vld [vmem:[%s0] sm:$0xff]
  %v22 = vld [vmem:[%s0 + $0x8] sm:$0xff]
  %v23 = vld [vmem:[%s0 + $0x10] sm:$0xff]
  %v24 = vld [vmem:[%s0 + $0x18] sm:$0xff]
  %v25 = vld [vmem:[%s1] sm:$0xff]
  %v26 = vld [vmem:[%s1 + $0x8] sm:$0xff]
  %v27 = vld [vmem:[%s4] sm:$0xff]
  %v30 = vperm.slane %v25, 0
  %v31 = vperm.slane %v25, 4
  %v32 = vperm.slane %v26, 0
  %v33 = vperm.slane %v26, 4
  %v38 = vperm.slane %v30, 0
  %v39 = vperm.slane %v31, 0
  %v40 = vperm.slane %v32, 0
  %v41 = vperm.slane %v33, 0
  %vm42 = vcmp.ne.f32.partialorder %v38, 0.0
  %vm43 = vcmp.ne.f32.partialorder %v39, 0.0
  %vm44 = vcmp.ne.f32.partialorder %v40, 0.0
  %vm45 = vcmp.ne.f32.partialorder %v41, 0.0
  %v46 = vperm.slane %v25, 1
  %v47 = vperm.slane %v25, 5
  %v48 = vperm.slane %v26, 1
  %v49 = vperm.slane %v26, 5
  %v54 = vperm.slane %v46, 1
  %v55 = vperm.slane %v47, 1
  %v56 = vperm.slane %v48, 1
  %v57 = vperm.slane %v49, 1
  %vm58 = vcmp.ne.f32.partialorder %v54, 0.0
  %vm59 = vcmp.ne.f32.partialorder %v55, 0.0
  %vm60 = vcmp.ne.f32.partialorder %v56, 0.0
  %vm61 = vcmp.ne.f32.partialorder %v57, 0.0
  %v62 = vperm.slane %v25, 2
  %v63 = vperm.slane %v25, 6
  %v64 = vperm.slane %v26, 2
  %v65 = vperm.slane %v26, 6
  %v70 = vperm.slane %v62, 2
  %v71 = vperm.slane %v63, 2
  %v72 = vperm.slane %v64, 2
  %v73 = vperm.slane %v65, 2
  %vm74 = vcmp.ne.f32.partialorder %v70, 0.0
  %vm75 = vcmp.ne.f32.partialorder %v71, 0.0
  %vm76 = vcmp.ne.f32.partialorder %v72, 0.0
  %vm77 = vcmp.ne.f32.partialorder %v73, 0.0
  %v78 = vperm.slane %v25, 3
  %v79 = vperm.slane %v25, 7
  %v80 = vperm.slane %v26, 3
  %v81 = vperm.slane %v26, 7
  %v86 = vperm.slane %v78, 3
  %v87 = vperm.slane %v79, 3
  %v88 = vperm.slane %v80, 3
  %v89 = vperm.slane %v81, 3
  %vm90 = vcmp.ne.f32.partialorder %v86, 0.0
  %vm91 = vcmp.ne.f32.partialorder %v87, 0.0
  %vm92 = vcmp.ne.f32.partialorder %v88, 0.0
  %vm93 = vcmp.ne.f32.partialorder %v89, 0.0
  %v94 = vld [vmem:[%s2] sm:$0xf]
  %95 = vrot.lane.b32.xlu0 %v21, 112
  %v96 = vpop.permute.xlu0 %95
  %97 = vrot.lane.b32.xlu0 %v22, 112
  %v98 = vpop.permute.xlu0 %97
  %99 = vrot.lane.b32.xlu0 %v23, 112
  %v100 = vpop.permute.xlu0 %99
  %101 = vrot.lane.b32.xlu0 %v24, 112
  %v102 = vpop.permute.xlu0 %101
  %v103 = vlaneseq
  %v104 = vand.u32 %v103, 127
  %vm105 = vcmp.lt.s32.totalorder %v104, 112
  %v106 = vsel %vm105, %v100, %v102
  %v107 = vsel %vm105, %v98, %v100
  %v108 = vsel %vm105, %v96, %v98
  %v109 = vsel %vm105, %v102, %v96
  %110 = vrot.lane.b32.xlu0 %v21, 16
  %v111 = vpop.permute.xlu0 %110
  %112 = vrot.lane.b32.xlu0 %v22, 16
  %v113 = vpop.permute.xlu0 %112
  %114 = vrot.lane.b32.xlu0 %v23, 16
  %v115 = vpop.permute.xlu0 %114
  %116 = vrot.lane.b32.xlu0 %v24, 16
  %v117 = vpop.permute.xlu0 %116
  %vm118 = vcmp.lt.s32.totalorder %v104, 16
  %v119 = vsel %vm118, %v115, %v117
  %v120 = vsel %vm118, %v113, %v115
  %v121 = vsel %vm118, %v111, %v113
  %v122 = vsel %vm118, %v117, %v111
  %v123 = vsel %vm42, %v108, %v122
  %v124 = vsel %vm43, %v107, %v121
  %v125 = vsel %vm44, %v106, %v120
  %v126 = vsel %vm45, %v109, %v119
  %v127 = vsel %vm58, %v122, %v108
  %v128 = vsel %vm59, %v121, %v107
  %v129 = vsel %vm60, %v120, %v106
  %v130 = vsel %vm61, %v119, %v109
  %131 = vrot.lane.b32.xlu0 %v123, 127
  %v132 = vpop.permute.xlu0 %131
  %133 = vrot.lane.b32.xlu0 %v124, 127
  %v134 = vpop.permute.xlu0 %133
  %135 = vrot.lane.b32.xlu0 %v125, 127
  %v136 = vpop.permute.xlu0 %135
  %137 = vrot.lane.b32.xlu0 %v126, 127
  %v138 = vpop.permute.xlu0 %137
  %vm139 = vcmp.lt.s32.totalorder %v104, 127
  %v140 = vsel %vm139, %v136, %v138
  %v141 = vsel %vm139, %v134, %v136
  %v142 = vsel %vm139, %v132, %v134
  %v143 = vsel %vm139, %v138, %v132
  %144 = vrot.lane.b32.xlu0 %v123, 1
  %v145 = vpop.permute.xlu0 %144
  %146 = vrot.lane.b32.xlu0 %v124, 1
  %v147 = vpop.permute.xlu0 %146
  %148 = vrot.lane.b32.xlu0 %v125, 1
  %v149 = vpop.permute.xlu0 %148
  %150 = vrot.lane.b32.xlu0 %v126, 1
  %v151 = vpop.permute.xlu0 %150
  %vm152 = vcmp.lt.s32.totalorder %v104, 1
  %v153 = vsel %vm152, %v149, %v151
  %v154 = vsel %vm152, %v147, %v149
  %v155 = vsel %vm152, %v145, %v147
  %v156 = vsel %vm152, %v151, %v145
  %v157 = vsel %vm74, %v142, %v156
  %v158 = vsel %vm75, %v141, %v155
  %v159 = vsel %vm76, %v140, %v154
  %v160 = vsel %vm77, %v143, %v153
  %v161 = vsel %vm90, %v156, %v142
  %v162 = vsel %vm91, %v155, %v141
  %v163 = vsel %vm92, %v154, %v140
  %v164 = vsel %vm93, %v153, %v143
  %165 = vrot.lane.b32.xlu0 %v21, 127
  %v166 = vpop.permute.xlu0 %165
  %167 = vrot.lane.b32.xlu0 %v22, 127
  %v168 = vpop.permute.xlu0 %167
  %169 = vrot.lane.b32.xlu0 %v23, 127
  %v170 = vpop.permute.xlu0 %169
  %171 = vrot.lane.b32.xlu0 %v24, 127
  %v172 = vpop.permute.xlu0 %171
  %v173 = vsel %vm139, %v170, %v172
  %v174 = vsel %vm139, %v168, %v170
  %v175 = vsel %vm139, %v166, %v168
  %v176 = vsel %vm139, %v172, %v166
  %177 = vrot.lane.b32.xlu0 %v21, 1
  %v178 = vpop.permute.xlu0 %177
  %179 = vrot.lane.b32.xlu0 %v22, 1
  %v180 = vpop.permute.xlu0 %179
  %181 = vrot.lane.b32.xlu0 %v23, 1
  %v182 = vpop.permute.xlu0 %181
  %183 = vrot.lane.b32.xlu0 %v24, 1
  %v184 = vpop.permute.xlu0 %183
  %v185 = vsel %vm152, %v182, %v184
  %v186 = vsel %vm152, %v180, %v182
  %v187 = vsel %vm152, %v178, %v180
  %v188 = vsel %vm152, %v184, %v178
  %v189 = vsel %vm74, %v175, %v188
  %v190 = vsel %vm75, %v174, %v187
  %v191 = vsel %vm76, %v173, %v186
  %v192 = vsel %vm77, %v176, %v185
  %v193 = vsel %vm90, %v188, %v175
  %v194 = vsel %vm91, %v187, %v174
  %v195 = vsel %vm92, %v186, %v173
  %v196 = vsel %vm93, %v185, %v176
  %197 = vrot.lane.b32.xlu0 %v127, 127
  %v198 = vpop.permute.xlu0 %197
  %199 = vrot.lane.b32.xlu0 %v128, 127
  %v200 = vpop.permute.xlu0 %199
  %201 = vrot.lane.b32.xlu0 %v129, 127
  %v202 = vpop.permute.xlu0 %201
  %203 = vrot.lane.b32.xlu0 %v130, 127
  %v204 = vpop.permute.xlu0 %203
  %v205 = vsel %vm139, %v202, %v204
  %v206 = vsel %vm139, %v200, %v202
  %v207 = vsel %vm139, %v198, %v200
  %v208 = vsel %vm139, %v204, %v198
  %209 = vrot.lane.b32.xlu0 %v127, 1
  %v210 = vpop.permute.xlu0 %209
  %211 = vrot.lane.b32.xlu0 %v128, 1
  %v212 = vpop.permute.xlu0 %211
  %213 = vrot.lane.b32.xlu0 %v129, 1
  %v214 = vpop.permute.xlu0 %213
  %215 = vrot.lane.b32.xlu0 %v130, 1
  %v216 = vpop.permute.xlu0 %215
  %v217 = vsel %vm152, %v214, %v216
  %v218 = vsel %vm152, %v212, %v214
  %v219 = vsel %vm152, %v210, %v212
  %v220 = vsel %vm152, %v216, %v210
  %v221 = vsel %vm74, %v207, %v220
  %v222 = vsel %vm75, %v206, %v219
  %v223 = vsel %vm76, %v205, %v218
  %v224 = vsel %vm77, %v208, %v217
  %v225 = vsel %vm90, %v220, %v207
  %v226 = vsel %vm91, %v219, %v206
  %v227 = vsel %vm92, %v218, %v205
  %v228 = vsel %vm93, %v217, %v208
  %v229 = vpack.c.bf16 %v123, %v157
  %v230 = vpack.c.bf16 %v124, %v158
  %v231 = vpack.c.bf16 %v125, %v159
  %v232 = vpack.c.bf16 %v126, %v160
  %v233 = vpack.c.bf16 %v189, %v161
  %v234 = vpack.c.bf16 %v190, %v162
  %v235 = vpack.c.bf16 %v191, %v163
  %v236 = vpack.c.bf16 %v192, %v164
  %v237 = vpack.c.bf16 %v193, %v21
  %v238 = vpack.c.bf16 %v194, %v22
  %v239 = vpack.c.bf16 %v195, %v23
  %v240 = vpack.c.bf16 %v196, %v24
  %v241 = vpack.c.bf16 %v127, %v221
  %v242 = vpack.c.bf16 %v128, %v222
  %v243 = vpack.c.bf16 %v129, %v223
  %v244 = vpack.c.bf16 %v130, %v224
  %v245 = vpack.c.bf16 %v225, %v225
  %v246 = vpack.c.bf16 %v226, %v226
  %v247 = vpack.c.bf16 %v227, %v227
  %v248 = vpack.c.bf16 %v228, %v228
  %250 = vset.pattern.permute.xlu0 0
  %251 = vperm.xlu0 %250, %v27
  %v252 = vpop.permute.xlu0 %251
  %vm254 = vcmask 588800
  %v256 = vsel %vm254, %v94, 0
  %vm258 = vcmask 1043456
  %v260 = vsel %vm258, %v245, 0
  %v263 = vsel %vm258, %v246, 0
  %v266 = vsel %vm258, %v247, 0
  %v269 = vsel %vm258, %v248, 0
  %271 = vmatpush.bf16.msra.mxu0 0
  %272 = vmatpush.bf16.msra.mxu0 0
  %273 = vmatpush.bf16.msra.mxu0 0
  %274 = vmatpush.bf16.msra.mxu0 %v260
  %275 = vmatpush.bf16.msra.mxu0 %v241
  %276 = vmatpush.bf16.msra.mxu0 %v237
  %277 = vmatpush.bf16.msra.mxu0 %v233
  %278 = vmatpush.bf16.msra.mxu0 %v229
  %279 = vmatmul.bf16.gmra.mxu0 %v256
  %v280 = vpop.f32.mrf.mxu0
  %v281 = vadd.f32 %v252, %v280
  %v282 = vpop.f32.mrf.mxu0
  %283 = vdwg.mxu0
  %284 = vmatpush.bf16.msra.mxu0 0
  %285 = vmatpush.bf16.msra.mxu0 0
  %286 = vmatpush.bf16.msra.mxu0 0
  %287 = vmatpush.bf16.msra.mxu0 %v263
  %288 = vmatpush.bf16.msra.mxu0 %v242
  %289 = vmatpush.bf16.msra.mxu0 %v238
  %290 = vmatpush.bf16.msra.mxu0 %v234
  %291 = vmatpush.bf16.msra.mxu0 %v230
  %292 = vmatmul.bf16.gmra.mxu0 %v256
  %v293 = vpop.f32.mrf.mxu0
  %v294 = vadd.f32 %v252, %v293
  %v295 = vpop.f32.mrf.mxu0
  %296 = vdwg.mxu0
  %297 = vmatpush.bf16.msra.mxu0 0
  %298 = vmatpush.bf16.msra.mxu0 0
  %299 = vmatpush.bf16.msra.mxu0 0
  %300 = vmatpush.bf16.msra.mxu0 %v266
  %301 = vmatpush.bf16.msra.mxu0 %v243
  %302 = vmatpush.bf16.msra.mxu0 %v239
  %303 = vmatpush.bf16.msra.mxu0 %v235
  %304 = vmatpush.bf16.msra.mxu0 %v231
  %305 = vmatmul.bf16.gmra.mxu0 %v256
  %v306 = vpop.f32.mrf.mxu0
  %v307 = vadd.f32 %v252, %v306
  %v308 = vpop.f32.mrf.mxu0
  %309 = vdwg.mxu0
  %310 = vmatpush.bf16.msra.mxu0 0
  %311 = vmatpush.bf16.msra.mxu0 0
  %312 = vmatpush.bf16.msra.mxu0 0
  %313 = vmatpush.bf16.msra.mxu0 %v269
  %314 = vmatpush.bf16.msra.mxu0 %v244
  %315 = vmatpush.bf16.msra.mxu0 %v240
  %316 = vmatpush.bf16.msra.mxu0 %v236
  %317 = vmatpush.bf16.msra.mxu0 %v232
  %318 = vmatmul.bf16.gmra.mxu0 %v256
  %v319 = vpop.f32.mrf.mxu0
  %v320 = vadd.f32 %v252, %v319
  %v321 = vpop.f32.mrf.mxu0
  %322 = vdwg.mxu0
  %v323 = vadd.f32 %v281, %v294
  %v324 = vadd.f32 %v323, %v307
  %v325 = vadd.f32 %v324, %v320
  %326 = vadd.xlane.f32.xlu0 %v325
  %v327 = vpop.xlane.xlu0 %326
  %v328 = vmul.f32 %v327, 0.001953125
  %v329 = vsub.f32 %v281, %v328
  %v330 = vsub.f32 %v294, %v328
  %v331 = vsub.f32 %v307, %v328
  %v332 = vsub.f32 %v320, %v328
  %v333 = vmul.f32 %v329, %v329
  %v334 = vmul.f32 %v330, %v330
  %v335 = vmul.f32 %v331, %v331
  %v336 = vmul.f32 %v332, %v332
  %v337 = vadd.f32 %v333, %v334
  %v338 = vadd.f32 %v337, %v335
  %v339 = vadd.f32 %v338, %v336
  %340 = vadd.xlane.f32.xlu0 %v339
  %v341 = vpop.xlane.xlu0 %340
  %v342 = vmul.f32 %v341, 0.001953125
  %v343 = vadd.f32 %v342, 1e-05
  %v344 = vrsqrt.pop %v343
  %v345 = vmul.f32 %v344, %v343
  %v346 = vmul.f32 %v345, %v344
  %v347 = vmul.f32 0.5, %v346
  %v348 = vsub.f32 1.5, %v347
  %v349 = vmul.f32 %v344, %v348
  %vm350 = vweird.f32 %v343
  %vm351 = vweird.f32 %v344
  %vm352 = vmor %vm350, %vm351
  %v353 = vsel %vm352, %v344, %v349
  %v354 = vmul.f32 %v27, %v353
  %v355 = vmul.f32 %v328, %v354
  %357 = vrot.lane.b32.xlu0 %v355, 1
  %v358 = vpop.permute.xlu0 %357
  %v360 = vsub.f32 %v27, %v358
  %362 = vset.pattern.permute.xlu0 1
  %363 = vperm.xlu0 %362, %v354
  %v364 = vpop.permute.xlu0 %363
  %v366 = vmul.f32 %v281, %v364
  %v367 = vmul.f32 %v294, %v364
  %v368 = vmul.f32 %v307, %v364
  %v369 = vmul.f32 %v320, %v364
  %371 = vset.pattern.permute.xlu0 2
  %372 = vperm.xlu0 %371, %v360
  %v373 = vpop.permute.xlu0 %372
  %v375 = vadd.f32 %v366, %v373
  %v376 = vadd.f32 %v367, %v373
  %v377 = vadd.f32 %v368, %v373
  %v378 = vadd.f32 %v369, %v373
  %vm379 = vcmp.ge.f32.partialorder %v375, 0.0
  %vm380 = vcmp.ge.f32.partialorder %v376, 0.0
  %vm381 = vcmp.ge.f32.partialorder %v377, 0.0
  %vm382 = vcmp.ge.f32.partialorder %v378, 0.0
  %v383 = vmul.f32 %v375, 0.1
  %v384 = vmul.f32 %v376, 0.1
  %v385 = vmul.f32 %v377, 0.1
  %v386 = vmul.f32 %v378, 0.1
  %v387 = vsel %vm379, %v375, %v383
  %v388 = vsel %vm380, %v376, %v384
  %v389 = vsel %vm381, %v377, %v385
  %v390 = vsel %vm382, %v378, %v386
  %v391 = vld [vmem:[%s3] sm:$0xf]
  %392 = vrot.lane.b32.xlu0 %v387, 112
  %v393 = vpop.permute.xlu0 %392
  %394 = vrot.lane.b32.xlu0 %v388, 112
  %v395 = vpop.permute.xlu0 %394
  %396 = vrot.lane.b32.xlu0 %v389, 112
  %v397 = vpop.permute.xlu0 %396
  %398 = vrot.lane.b32.xlu0 %v390, 112
  %v399 = vpop.permute.xlu0 %398
  %v400 = vsel %vm105, %v397, %v399
  %v401 = vsel %vm105, %v395, %v397
  %v402 = vsel %vm105, %v393, %v395
  %v403 = vsel %vm105, %v399, %v393
  %404 = vrot.lane.b32.xlu0 %v387, 16
  %v405 = vpop.permute.xlu0 %404
  %406 = vrot.lane.b32.xlu0 %v388, 16
  %v407 = vpop.permute.xlu0 %406
  %408 = vrot.lane.b32.xlu0 %v389, 16
  %v409 = vpop.permute.xlu0 %408
  %410 = vrot.lane.b32.xlu0 %v390, 16
  %v411 = vpop.permute.xlu0 %410
  %v412 = vsel %vm118, %v409, %v411
  %v413 = vsel %vm118, %v407, %v409
  %v414 = vsel %vm118, %v405, %v407
  %v415 = vsel %vm118, %v411, %v405
  %v416 = vsel %vm42, %v402, %v415
  %v417 = vsel %vm43, %v401, %v414
  %v418 = vsel %vm44, %v400, %v413
  %v419 = vsel %vm45, %v403, %v412
  %v420 = vsel %vm58, %v415, %v402
  %v421 = vsel %vm59, %v414, %v401
  %v422 = vsel %vm60, %v413, %v400
  %v423 = vsel %vm61, %v412, %v403
  %424 = vrot.lane.b32.xlu0 %v416, 127
  %v425 = vpop.permute.xlu0 %424
  %426 = vrot.lane.b32.xlu0 %v417, 127
  %v427 = vpop.permute.xlu0 %426
  %428 = vrot.lane.b32.xlu0 %v418, 127
  %v429 = vpop.permute.xlu0 %428
  %430 = vrot.lane.b32.xlu0 %v419, 127
  %v431 = vpop.permute.xlu0 %430
  %v432 = vsel %vm139, %v429, %v431
  %v433 = vsel %vm139, %v427, %v429
  %v434 = vsel %vm139, %v425, %v427
  %v435 = vsel %vm139, %v431, %v425
  %436 = vrot.lane.b32.xlu0 %v416, 1
  %v437 = vpop.permute.xlu0 %436
  %438 = vrot.lane.b32.xlu0 %v417, 1
  %v439 = vpop.permute.xlu0 %438
  %440 = vrot.lane.b32.xlu0 %v418, 1
  %v441 = vpop.permute.xlu0 %440
  %442 = vrot.lane.b32.xlu0 %v419, 1
  %v443 = vpop.permute.xlu0 %442
  %v444 = vsel %vm152, %v441, %v443
  %v445 = vsel %vm152, %v439, %v441
  %v446 = vsel %vm152, %v437, %v439
  %v447 = vsel %vm152, %v443, %v437
  %v448 = vsel %vm74, %v434, %v447
  %v449 = vsel %vm75, %v433, %v446
  %v450 = vsel %vm76, %v432, %v445
  %v451 = vsel %vm77, %v435, %v444
  %v452 = vsel %vm90, %v447, %v434
  %v453 = vsel %vm91, %v446, %v433
  %v454 = vsel %vm92, %v445, %v432
  %v455 = vsel %vm93, %v444, %v435
  %456 = vrot.lane.b32.xlu0 %v387, 127
  %v457 = vpop.permute.xlu0 %456
  %458 = vrot.lane.b32.xlu0 %v388, 127
  %v459 = vpop.permute.xlu0 %458
  %460 = vrot.lane.b32.xlu0 %v389, 127
  %v461 = vpop.permute.xlu0 %460
  %462 = vrot.lane.b32.xlu0 %v390, 127
  %v463 = vpop.permute.xlu0 %462
  %v464 = vsel %vm139, %v461, %v463
  %v465 = vsel %vm139, %v459, %v461
  %v466 = vsel %vm139, %v457, %v459
  %v467 = vsel %vm139, %v463, %v457
  %468 = vrot.lane.b32.xlu0 %v387, 1
  %v469 = vpop.permute.xlu0 %468
  %470 = vrot.lane.b32.xlu0 %v388, 1
  %v471 = vpop.permute.xlu0 %470
  %472 = vrot.lane.b32.xlu0 %v389, 1
  %v473 = vpop.permute.xlu0 %472
  %474 = vrot.lane.b32.xlu0 %v390, 1
  %v475 = vpop.permute.xlu0 %474
  %v476 = vsel %vm152, %v473, %v475
  %v477 = vsel %vm152, %v471, %v473
  %v478 = vsel %vm152, %v469, %v471
  %v479 = vsel %vm152, %v475, %v469
  %v480 = vsel %vm74, %v466, %v479
  %v481 = vsel %vm75, %v465, %v478
  %v482 = vsel %vm76, %v464, %v477
  %v483 = vsel %vm77, %v467, %v476
  %v484 = vsel %vm90, %v479, %v466
  %v485 = vsel %vm91, %v478, %v465
  %v486 = vsel %vm92, %v477, %v464
  %v487 = vsel %vm93, %v476, %v467
  %488 = vrot.lane.b32.xlu0 %v420, 127
  %v489 = vpop.permute.xlu0 %488
  %490 = vrot.lane.b32.xlu0 %v421, 127
  %v491 = vpop.permute.xlu0 %490
  %492 = vrot.lane.b32.xlu0 %v422, 127
  %v493 = vpop.permute.xlu0 %492
  %494 = vrot.lane.b32.xlu0 %v423, 127
  %v495 = vpop.permute.xlu0 %494
  %v496 = vsel %vm139, %v493, %v495
  %v497 = vsel %vm139, %v491, %v493
  %v498 = vsel %vm139, %v489, %v491
  %v499 = vsel %vm139, %v495, %v489
  %500 = vrot.lane.b32.xlu0 %v420, 1
  %v501 = vpop.permute.xlu0 %500
  %502 = vrot.lane.b32.xlu0 %v421, 1
  %v503 = vpop.permute.xlu0 %502
  %504 = vrot.lane.b32.xlu0 %v422, 1
  %v505 = vpop.permute.xlu0 %504
  %506 = vrot.lane.b32.xlu0 %v423, 1
  %v507 = vpop.permute.xlu0 %506
  %v508 = vsel %vm152, %v505, %v507
  %v509 = vsel %vm152, %v503, %v505
  %v510 = vsel %vm152, %v501, %v503
  %v511 = vsel %vm152, %v507, %v501
  %v512 = vsel %vm74, %v498, %v511
  %v513 = vsel %vm75, %v497, %v510
  %v514 = vsel %vm76, %v496, %v509
  %v515 = vsel %vm77, %v499, %v508
  %v516 = vsel %vm90, %v511, %v498
  %v517 = vsel %vm91, %v510, %v497
  %v518 = vsel %vm92, %v509, %v496
  %v519 = vsel %vm93, %v508, %v499
  %v520 = vpack.c.bf16 %v416, %v448
  %v521 = vpack.c.bf16 %v417, %v449
  %v522 = vpack.c.bf16 %v418, %v450
  %v523 = vpack.c.bf16 %v419, %v451
  %v524 = vpack.c.bf16 %v480, %v452
  %v525 = vpack.c.bf16 %v481, %v453
  %v526 = vpack.c.bf16 %v482, %v454
  %v527 = vpack.c.bf16 %v483, %v455
  %v528 = vpack.c.bf16 %v484, %v387
  %v529 = vpack.c.bf16 %v485, %v388
  %v530 = vpack.c.bf16 %v486, %v389
  %v531 = vpack.c.bf16 %v487, %v390
  %v532 = vpack.c.bf16 %v420, %v512
  %v533 = vpack.c.bf16 %v421, %v513
  %v534 = vpack.c.bf16 %v422, %v514
  %v535 = vpack.c.bf16 %v423, %v515
  %v536 = vpack.c.bf16 %v516, %v516
  %v537 = vpack.c.bf16 %v517, %v517
  %v538 = vpack.c.bf16 %v518, %v518
  %v539 = vpack.c.bf16 %v519, %v519
  %540 = vset.pattern.permute.xlu0 3
  %541 = vperm.xlu0 %540, %v27
  %v542 = vpop.permute.xlu0 %541
  %v545 = vsel %vm254, %v391, 0
  %v548 = vsel %vm258, %v536, 0
  %v551 = vsel %vm258, %v537, 0
  %v554 = vsel %vm258, %v538, 0
  %v557 = vsel %vm258, %v539, 0
  %559 = vmatpush.bf16.msra.mxu0 0
  %560 = vmatpush.bf16.msra.mxu0 0
  %561 = vmatpush.bf16.msra.mxu0 0
  %562 = vmatpush.bf16.msra.mxu0 %v548
  %563 = vmatpush.bf16.msra.mxu0 %v532
  %564 = vmatpush.bf16.msra.mxu0 %v528
  %565 = vmatpush.bf16.msra.mxu0 %v524
  %566 = vmatpush.bf16.msra.mxu0 %v520
  %567 = vmatmul.bf16.gmra.mxu0 %v545
  %v568 = vpop.f32.mrf.mxu0
  %v569 = vadd.f32 %v542, %v568
  %v570 = vpop.f32.mrf.mxu0
  %571 = vdwg.mxu0
  %572 = vmatpush.bf16.msra.mxu0 0
  %573 = vmatpush.bf16.msra.mxu0 0
  %574 = vmatpush.bf16.msra.mxu0 0
  %575 = vmatpush.bf16.msra.mxu0 %v551
  %576 = vmatpush.bf16.msra.mxu0 %v533
  %577 = vmatpush.bf16.msra.mxu0 %v529
  %578 = vmatpush.bf16.msra.mxu0 %v525
  %579 = vmatpush.bf16.msra.mxu0 %v521
  %580 = vmatmul.bf16.gmra.mxu0 %v545
  %v581 = vpop.f32.mrf.mxu0
  %v582 = vadd.f32 %v542, %v581
  %v583 = vpop.f32.mrf.mxu0
  %584 = vdwg.mxu0
  %585 = vmatpush.bf16.msra.mxu0 0
  %586 = vmatpush.bf16.msra.mxu0 0
  %587 = vmatpush.bf16.msra.mxu0 0
  %588 = vmatpush.bf16.msra.mxu0 %v554
  %589 = vmatpush.bf16.msra.mxu0 %v534
  %590 = vmatpush.bf16.msra.mxu0 %v530
  %591 = vmatpush.bf16.msra.mxu0 %v526
  %592 = vmatpush.bf16.msra.mxu0 %v522
  %593 = vmatmul.bf16.gmra.mxu0 %v545
  %v594 = vpop.f32.mrf.mxu0
  %v595 = vadd.f32 %v542, %v594
  %v596 = vpop.f32.mrf.mxu0
  %597 = vdwg.mxu0
  %598 = vmatpush.bf16.msra.mxu0 0
  %599 = vmatpush.bf16.msra.mxu0 0
  %600 = vmatpush.bf16.msra.mxu0 0
  %601 = vmatpush.bf16.msra.mxu0 %v557
  %602 = vmatpush.bf16.msra.mxu0 %v535
  %603 = vmatpush.bf16.msra.mxu0 %v531
  %604 = vmatpush.bf16.msra.mxu0 %v527
  %605 = vmatpush.bf16.msra.mxu0 %v523
  %606 = vmatmul.bf16.gmra.mxu0 %v545
  %v607 = vpop.f32.mrf.mxu0
  %v608 = vadd.f32 %v542, %v607
  %v609 = vpop.f32.mrf.mxu0
  %610 = vdwg.mxu0
  %v611 = vadd.f32 %v569, %v582
  %v612 = vadd.f32 %v611, %v595
  %v613 = vadd.f32 %v612, %v608
  %614 = vadd.xlane.f32.xlu0 %v613
  %v615 = vpop.xlane.xlu0 %614
  %v616 = vmul.f32 %v615, 0.001953125
  %v617 = vsub.f32 %v569, %v616
  %v618 = vsub.f32 %v582, %v616
  %v619 = vsub.f32 %v595, %v616
  %v620 = vsub.f32 %v608, %v616
  %v621 = vmul.f32 %v617, %v617
  %v622 = vmul.f32 %v618, %v618
  %v623 = vmul.f32 %v619, %v619
  %v624 = vmul.f32 %v620, %v620
  %v625 = vadd.f32 %v621, %v622
  %v626 = vadd.f32 %v625, %v623
  %v627 = vadd.f32 %v626, %v624
  %628 = vadd.xlane.f32.xlu0 %v627
  %v629 = vpop.xlane.xlu0 %628
  %v630 = vmul.f32 %v629, 0.001953125
  %v631 = vadd.f32 %v630, 1e-05
  %v632 = vrsqrt.pop %v631
  %v633 = vmul.f32 %v632, %v631
  %v634 = vmul.f32 %v633, %v632
  %v635 = vmul.f32 0.5, %v634
  %v636 = vsub.f32 1.5, %v635
  %v637 = vmul.f32 %v632, %v636
  %vm638 = vweird.f32 %v631
  %vm639 = vweird.f32 %v632
  %vm640 = vmor %vm638, %vm639
  %v641 = vsel %vm640, %v632, %v637
  %v642 = vmul.f32 %v27, %v641
  %v643 = vmul.f32 %v616, %v642
  %645 = vrot.lane.b32.xlu0 %v643, 1
  %v646 = vpop.permute.xlu0 %645
  %v648 = vsub.f32 %v27, %v646
  %650 = vset.pattern.permute.xlu0 4
  %651 = vperm.xlu0 %650, %v642
  %v652 = vpop.permute.xlu0 %651
  %v654 = vmul.f32 %v569, %v652
  %v655 = vmul.f32 %v582, %v652
  %v656 = vmul.f32 %v595, %v652
  %v657 = vmul.f32 %v608, %v652
  %v658 = vadd.f32 %v21, %v654
  %v659 = vadd.f32 %v22, %v655
  %v660 = vadd.f32 %v23, %v656
  %v661 = vadd.f32 %v24, %v657
  %663 = vset.pattern.permute.xlu0 5
  %664 = vperm.xlu0 %663, %v648
  %v665 = vpop.permute.xlu0 %664
  %v667 = vadd.f32 %v658, %v665
  %v668 = vadd.f32 %v659, %v665
  %v669 = vadd.f32 %v660, %v665
  %v670 = vadd.f32 %v661, %v665
  %671 = vst [vmem:[%s5] sm:$0xff] %v667
  %672 = vst [vmem:[%s5 + $0x8] sm:$0xff] %v668
  %673 = vst [vmem:[%s5 + $0x10] sm:$0xff] %v669
  %674 = vst [vmem:[%s5 + $0x18] sm:$0xff] %v670
  // Predicated region
  $region22: #{resnet_block_bn.1} parent=0 // pred_check
    _
  $region23: #{resnet_block_bn.1} parent=0 // pred_check_branch
    %676 = sbr.rel (0) target = $region25
  $region24: #{resnet_block_bn.1} parent=0 // pred_region
    _
  $region25: #{resnet_block_bn.1} parent=0 // pred_fallthru
    _
  // Predicated region
  $region26: #{resnet_block_bn.1} parent=0 // pred_check
    _
  $region27: #{resnet_block_bn.1} parent=0 // pred_check_branch
    %678 = sbr.rel (0) target = $region29
  $region28: #{resnet_block_bn.1} parent=0 // pred_region
    _
  $region29: #{resnet_block_bn.1} parent=0 // pred_fallthru
    _

</llo_original>
